<compile_context>
chip_gen: v7x
topology: tpu7x:2x2x1
jax: 0.10.0
libtpu: 0.0.40
codegen_flags: <defaults>
</compile_context>

<pallas_src>
import functools

import jax
import jax.numpy as jnp
import numpy as np
from jax.experimental import pallas as pl
from jax.experimental.pallas import tpu as pltpu


# ---------------------------------------------------------------------------
# Fused kernel: conv (banded matmul + row combine) + bias + ReLU + 2x2 maxpool
#               + linear.  Everything is matmul / elementwise — no relayouts.
# ---------------------------------------------------------------------------
def cnn_fused_kernel(x_ref, t_ref, rshift_ref, bias_ref, lshift_ref, w1_ref,
                     mask_ref, ssum_ref, rcoll_ref, fcb_ref, o_ref):
    f32 = jnp.float32
    cl = bias_ref.shape[1]                 # conv lane width (Wout*hidden -> 128)
    ksize = t_ref.shape[1] // cl           # number of kernel rows

    # (1) row-conv: contract the (width, channel) lanes of every image row for
    #     every kernel-row offset at once:  (R, W*C) @ (W*C, ksize*cl).
    y = jnp.dot(x_ref[...], t_ref[...], preferred_element_type=f32)

    # (2) combine kernel-row offsets: block i contributes at row r from row
    #     r+i.  The row shift is a precomputed 0/1 matmul (MXU), so no sublane
    #     roll / unaligned slice is needed.
    conv = y[:, 0:cl]
    for i in range(1, ksize):
        conv = conv + jnp.dot(rshift_ref[i - 1], y[:, i * cl:(i + 1) * cl],
                              preferred_element_type=f32)

    # (3) shared conv bias + ReLU.  Rows/lanes outside the valid conv output
    #     hold garbage here but never reach the scores (zero FC weights and the
    #     keep-mask below — asserted at prepare time).
    conv = jnp.maximum(conv + bias_ref[...], 0.0)

    # (4) 2x2 max-pool: adjacent wo lane-blocks (lane shift by `hidden` via a
    #     precomputed permutation matmul), then adjacent image rows (row shift
    #     by 1, reusing rshift[0]).
    poolw = jnp.maximum(conv, jnp.dot(conv, lshift_ref[...],
                                      preferred_element_type=f32))
    pooled = jnp.maximum(poolw, jnp.dot(rshift_ref[0], poolw,
                                        preferred_element_type=f32))

    # (5) FC stage 1: contract the (pw, f) lanes; columns are (ph, class).
    #     The precomputed block-diagonal keep-mask keeps, for row r = n*H+2*ph,
    #     exactly its own ph column block (replaces the old in-kernel
    #     iota+compare+where — review item 1).
    a = jnp.dot(pooled, w1_ref[...], preferred_element_type=f32)
    a = a * mask_ref[...]

    # (6) FC stage 2: per-sample row sum (precomputed 0/1 matmul), collapse the
    #     ph class-blocks, add the FC bias.
    t = jnp.dot(ssum_ref[...], a, preferred_element_type=f32)
    o_ref[...] = (jnp.dot(t, rcoll_ref[...], preferred_element_type=f32)
                  + fcb_ref[...]).astype(o_ref.dtype)


# ---------------------------------------------------------------------------
# One-time parameter preparation (hoisted out of the per-call forward path)
# ---------------------------------------------------------------------------
def prepare_params(conv_w, conv_b, fc_w, fc_b, *, im_size, ksize, batch_tile):
    """Precompute every re-layouted weight / selection matrix.

    batch_tile (NB): samples per grid step.  Pass the whole (small) batch for a
    single grid step (best on 1-TC v5e/v6e); for large batches use a multiple
    of 8 so the output BlockSpec tiles cleanly and the "parallel" grid shards
    across v7x's two TensorCores.
    """
    C, H, W = im_size
    hidden = int(conv_w.shape[0])
    n_classes = int(fc_w.shape[0])
    Hout, Wout = H - ksize + 1, W - ksize + 1
    Hp, Wp = (Hout - 2) // 2 + 1, (Wout - 2) // 2 + 1
    NB = int(batch_tile)
    R = NB * H                                    # image rows per batch tile
    CL = ((Wout * hidden + 127) // 128) * 128     # conv lane width (lane aligned)
    assert CL >= Wout * hidden and CL % hidden == 0

    cw = np.asarray(conv_w, np.float32)           # (hidden, C, k, k)
    cb = np.asarray(conv_b, np.float32)
    fw = np.asarray(fc_w, np.float32).reshape(n_classes, hidden, Hp, Wp)
    fb = np.asarray(fc_b, np.float32)

    # (a) banded row-conv weight: T[w*C+c, i*CL + wo*hidden + f] = cw[f,c,i,w-wo].
    #     Padded columns (wo >= Wout, lanes >= Wout*hidden) stay exactly zero.
    t_mat = np.zeros((W * C, ksize * CL), np.float32)
    for i in range(ksize):
        for j in range(ksize):
            for wo in range(Wout):
                w = wo + j
                col = i * CL + wo * hidden
                t_mat[w * C:(w + 1) * C, col:col + hidden] = cw[:, :, i, j].T

    # (b) row-shift matrices: (S_i @ M)[r] = M[r+i]; S_1 is reused by the pool.
    n_sh = max(ksize - 1, 1)
    rshift = np.stack([np.eye(R, R, k=i, dtype=np.float32)
                       for i in range(1, n_sh + 1)])

    # (c) conv bias broadcast over the wo lane-blocks (zero in padded lanes).
    br = np.zeros((CL // hidden, hidden), np.float32)
    br[:Wout, :] = cb[None, :]
    bias_row = br.reshape(1, CL)

    # (d) lane-shift-by-hidden matrix: (M @ L)[:, l] = M[:, l + hidden].
    lshift = np.eye(CL, CL, k=-hidden, dtype=np.float32)

    # (e) FC stage-1 weight: rows = pooled lanes (wo = 2*pw, f); cols (ph, cls).
    #     Torch flatten order is (f, ph, pw)  ->  fc_w[cls, f*Hp*Wp + ph*Wp + pw].
    w1 = np.zeros((CL // hidden, hidden, Hp, n_classes), np.float32)
    w1[0:2 * Wp:2] = np.transpose(fw, (3, 1, 2, 0))       # (pw, f, ph, class)
    w1 = w1.reshape(CL, Hp * n_classes)

    # (f) block-diagonal keep-mask: row r belongs to ph iff (r mod H) == 2*ph.
    row_mod = np.arange(R) % H
    ph_of_col = np.repeat(np.arange(Hp), n_classes)
    mask = (row_mod[:, None] == 2 * ph_of_col[None, :]).astype(np.float32)

    # (g) per-sample row-sum matrix, ph-block collapser and FC bias row.
    ssum = (np.arange(NB)[:, None] == (np.arange(R)[None, :] // H)).astype(np.float32)
    rcoll = np.tile(np.eye(n_classes, dtype=np.float32), (Hp, 1))
    fcb_row = fb.reshape(1, n_classes)

    # Safety (review correctness concern): every lane / row that can hold
    # conv/pool garbage must have zero downstream weight so padding never leaks.
    lane_wo = np.arange(CL) // hidden
    bad_lanes = (lane_wo % 2 == 1) | (lane_wo >= 2 * Wp)
    assert not np.any(w1[bad_lanes]), "garbage lanes must carry zero FC weight"
    bad_rows = (row_mod % 2 == 1) | (row_mod > 2 * (Hp - 1))
    assert not np.any(mask[bad_rows]), "invalid conv rows must be masked out"

    params = (t_mat, rshift, bias_row, lshift, w1, mask, ssum, rcoll, fcb_row)
    return tuple(jnp.asarray(p) for p in params)


# ---------------------------------------------------------------------------
# Forward pass: one tiny transpose + ONE fused pallas_call
# ---------------------------------------------------------------------------
@jax.jit
def cnn_forward(x, t_mat, rshift, bias_row, lshift, w1, mask, ssum, rcoll,
                fcb_row):
    N, C, H, W = x.shape
    NB, R = ssum.shape
    CL = bias_row.shape[1]
    ksize = t_mat.shape[1] // CL
    n_classes = rcoll.shape[1]
    hpc = w1.shape[1]
    assert R == NB * H, "params were prepared for a different image height"
    assert t_mat.shape[0] == W * C, "params were prepared for a different W*C"

    n_tiles = pl.cdiv(N, NB)
    n_pad = n_tiles * NB
    assert n_tiles == 1 or NB % 8 == 0, \
        "with >1 batch tile, batch_tile must be a multiple of 8"
    if n_pad != N:
        x = jnp.pad(x, ((0, n_pad - N), (0, 0), (0, 0), (0, 0)))

    # The ONLY producer op in front of the kernel: NCHW -> NHWC (+free reshape)
    # of the raw ~8 KB image.  Conv / pool / FC all happen inside the kernel.
    xrows = jnp.transpose(x, (0, 2, 3, 1)).reshape(n_pad * H, W * C)

    # Advisory cost estimate so XLA schedules the custom call sensibly.
    flops_tile = 2 * R * (W * C) * (ksize * CL)           # row-conv
    flops_tile += 2 * (ksize - 1) * R * R * CL            # kernel-row combine
    flops_tile += 2 * R * CL * CL + 2 * R * R * CL        # pooling shifts
    flops_tile += 2 * R * CL * hpc                        # FC stage 1
    flops_tile += 2 * NB * R * hpc + 2 * NB * hpc * n_classes
    const_bytes = 4 * sum(int(np.prod(a.shape)) for a in
                          (t_mat, rshift, bias_row, lshift, w1, mask, ssum,
                           rcoll, fcb_row))
    cost = pl.CostEstimate(
        flops=int(n_tiles * flops_tile), transcendentals=0,
        bytes_accessed=int(4 * (xrows.size + n_pad * n_classes) + const_bytes))

    whole = lambda a: pl.BlockSpec(a.shape, lambda b: (0,) * a.ndim)
    out = pl.pallas_call(
        cnn_fused_kernel,
        out_shape=jax.ShapeDtypeStruct((n_pad, n_classes), jnp.float32),
        grid=(n_tiles,),
        in_specs=[
            pl.BlockSpec((NB * H, W * C), lambda b: (b, 0)),  # per-tile rows
            whole(t_mat), whole(rshift), whole(bias_row), whole(lshift),
            whole(w1), whole(mask), whole(ssum), whole(rcoll), whole(fcb_row),
        ],
        out_specs=pl.BlockSpec((NB, n_classes), lambda b: (b, 0)),
        compiler_params=pltpu.CompilerParams(
            dimension_semantics=("parallel",)),  # batch tiles -> both TCs on v7x
        cost_estimate=cost,
    )(xrows, t_mat, rshift, bias_row, lshift, w1, mask, ssum, rcoll, fcb_row)
    return out[:N]


# ---------------------------------------------------------------------------
# Pure-JAX reference (matches the PyTorch forward exactly)
# ---------------------------------------------------------------------------
def cnn_reference(x, conv_w, conv_b, fc_w, fc_b):
    y = jax.lax.conv_general_dilated(
        x, conv_w, window_strides=(1, 1), padding="VALID",
        dimension_numbers=("NCHW", "OIHW", "NCHW"))
    y = y + conv_b[None, :, None, None]
    y = jnp.maximum(y, 0.0)
    y = jax.lax.reduce_window(
        y, -jnp.inf, jax.lax.max, (1, 1, 2, 2), (1, 1, 2, 2), "VALID")
    flat = y.reshape(x.shape[0], -1)
    return flat @ fc_w.T + fc_b


if __name__ == "__main__":
    # Module config: im_size=(4,16,16), hidden_dim=8, kernel_size=3, n_classes=10
    N, C, H, W = 2, 4, 16, 16
    hidden_dim, kernel_size, n_classes = 8, 3, 10

    key = jax.random.PRNGKey(0)
    k1, k2, k3, k4, k5 = jax.random.split(key, 5)
    Hout, Wout = H - kernel_size + 1, W - kernel_size + 1
    Hpool, Wpool = 1 + (Hout - 2) // 2, 1 + (Wout - 2) // 2
    conv_w = jax.random.normal(k1, (hidden_dim, C, kernel_size, kernel_size),
                               jnp.float32) * 0.1
    conv_b = jax.random.normal(k2, (hidden_dim,), jnp.float32) * 0.1
    fc_w = jax.random.normal(k3, (n_classes, hidden_dim * Hpool * Wpool),
                             jnp.float32) * 0.05
    fc_b = jax.random.normal(k4, (n_classes,), jnp.float32) * 0.05
    x = jax.random.normal(k5, (N, C, H, W), jnp.float32)

    # One-time weight / selection-matrix re-layouts (hoisted out of the
    # per-call path).  batch_tile = whole batch -> single grid step here.
    params = prepare_params(conv_w, conv_b, fc_w, fc_b,
                            im_size=(C, H, W), ksize=kernel_size, batch_tile=N)
    params = jax.block_until_ready(params)

    scores = jax.block_until_ready(cnn_forward(x, *params))
    ref = jax.block_until_ready(cnn_reference(x, conv_w, conv_b, fc_w, fc_b))

    assert scores.shape == (N, n_classes), scores.shape
    # Kernel runs entirely in f32 (typically agrees to ~1e-5); the headroom is
    # for XLA's default-precision conv in the reference on some generations.
    np.testing.assert_allclose(np.asarray(scores), np.asarray(ref),
                               rtol=1e-3, atol=1e-3)
    print("KERNEL_OK")
</pallas_src>

<mosaic_0001>
module attributes {stable_mosaic.version = 11 : i64} {
  func.func @cnn_fused_kernel(%arg0: i32, %arg1: memref<32x64xf32, #tpu.memory_space<vmem>>, %arg2: memref<64x384xf32, #tpu.memory_space<vmem>>, %arg3: memref<2x32x32xf32, #tpu.memory_space<vmem>>, %arg4: memref<1x128xf32, #tpu.memory_space<vmem>>, %arg5: memref<128x128xf32, #tpu.memory_space<vmem>>, %arg6: memref<128x70xf32, #tpu.memory_space<vmem>>, %arg7: memref<32x70xf32, #tpu.memory_space<vmem>>, %arg8: memref<2x32xf32, #tpu.memory_space<vmem>>, %arg9: memref<70x10xf32, #tpu.memory_space<vmem>>, %arg10: memref<1x10xf32, #tpu.memory_space<vmem>>, %arg11: memref<2x10xf32, #tpu.memory_space<vmem>>) attributes {dimension_semantics = [#tpu.dimension_semantics<parallel>], iteration_bounds = array<i64: 1>, scalar_prefetch = 0 : i64, scratch_operands = 0 : i64, tpu.core_type = #tpu.core_type<tc>, window_params = [{transform_indices = @transform_0, window_bounds = array<i64: 32, 64>}, {pipeline_mode = #tpu.pipeline_mode<synchronous>, transform_indices = @transform_1, window_bounds = array<i64: 64, 384>}, {pipeline_mode = #tpu.pipeline_mode<synchronous>, transform_indices = @transform_2, window_bounds = array<i64: 2, 32, 32>}, {pipeline_mode = #tpu.pipeline_mode<synchronous>, transform_indices = @transform_3, window_bounds = array<i64: 1, 128>}, {pipeline_mode = #tpu.pipeline_mode<synchronous>, transform_indices = @transform_4, window_bounds = array<i64: 128, 128>}, {pipeline_mode = #tpu.pipeline_mode<synchronous>, transform_indices = @transform_5, window_bounds = array<i64: 128, 70>}, {pipeline_mode = #tpu.pipeline_mode<synchronous>, transform_indices = @transform_6, window_bounds = array<i64: 32, 70>}, {pipeline_mode = #tpu.pipeline_mode<synchronous>, transform_indices = @transform_7, window_bounds = array<i64: 2, 32>}, {pipeline_mode = #tpu.pipeline_mode<synchronous>, transform_indices = @transform_8, window_bounds = array<i64: 70, 10>}, {pipeline_mode = #tpu.pipeline_mode<synchronous>, transform_indices = @transform_9, window_bounds = array<i64: 1, 10>}, {transform_indices = @transform_10, window_bounds = array<i64: 2, 10>}]} {
    %c0 = arith.constant 0 : index
    %c0_0 = arith.constant 0 : index
    %0 = vector.load %arg1[%c0, %c0_0] : memref<32x64xf32, #tpu.memory_space<vmem>>, vector<32x64xf32>
    %c0_1 = arith.constant 0 : index
    %c0_2 = arith.constant 0 : index
    %1 = vector.load %arg2[%c0_1, %c0_2] : memref<64x384xf32, #tpu.memory_space<vmem>>, vector<64x384xf32>
    %cst = arith.constant dense<0.000000e+00> : vector<32x384xf32>
    %2 = tpu.matmul %0, %1, %cst {dimension_numbers = #tpu.dot_dimension_numbers<[1], [0], [0], [1], [0, 0, 1, 1], [], []>} : vector<32x64xf32>, vector<64x384xf32>, vector<32x384xf32> -> vector<32x384xf32>
    %3 = vector.extract_strided_slice %2 {offsets = [0, 0], sizes = [32, 128], strides = [1, 1]} : vector<32x384xf32> to vector<32x128xf32>
    %c0_3 = arith.constant 0 : index
    %c0_4 = arith.constant 0 : index
    %c0_5 = arith.constant 0 : index
    %4 = vector.load %arg3[%c0_3, %c0_4, %c0_5] : memref<2x32x32xf32, #tpu.memory_space<vmem>>, vector<1x32x32xf32>
    %5 = vector.shape_cast %4 : vector<1x32x32xf32> to vector<32x32xf32>
    %6 = vector.extract_strided_slice %2 {offsets = [0, 128], sizes = [32, 128], strides = [1, 1]} : vector<32x384xf32> to vector<32x128xf32>
    %cst_6 = arith.constant dense<0.000000e+00> : vector<32x128xf32>
    %7 = tpu.matmul %5, %6, %cst_6 {dimension_numbers = #tpu.dot_dimension_numbers<[1], [0], [0], [1], [0, 0, 1, 1], [], []>} : vector<32x32xf32>, vector<32x128xf32>, vector<32x128xf32> -> vector<32x128xf32>
    %8 = arith.addf %3, %7 : vector<32x128xf32>
    %c1 = arith.constant 1 : index
    %c0_7 = arith.constant 0 : index
    %c0_8 = arith.constant 0 : index
    %9 = vector.load %arg3[%c1, %c0_7, %c0_8] : memref<2x32x32xf32, #tpu.memory_space<vmem>>, vector<1x32x32xf32>
    %10 = vector.shape_cast %9 : vector<1x32x32xf32> to vector<32x32xf32>
    %11 = vector.extract_strided_slice %2 {offsets = [0, 256], sizes = [32, 128], strides = [1, 1]} : vector<32x384xf32> to vector<32x128xf32>
    %cst_9 = arith.constant dense<0.000000e+00> : vector<32x128xf32>
    %12 = tpu.matmul %10, %11, %cst_9 {dimension_numbers = #tpu.dot_dimension_numbers<[1], [0], [0], [1], [0, 0, 1, 1], [], []>} : vector<32x32xf32>, vector<32x128xf32>, vector<32x128xf32> -> vector<32x128xf32>
    %13 = arith.addf %8, %12 : vector<32x128xf32>
    %c0_10 = arith.constant 0 : index
    %c0_11 = arith.constant 0 : index
    %14 = vector.load %arg4[%c0_10, %c0_11] : memref<1x128xf32, #tpu.memory_space<vmem>>, vector<1x128xf32>
    %15 = vector.broadcast %14 : vector<1x128xf32> to vector<32x128xf32>
    %16 = arith.addf %13, %15 : vector<32x128xf32>
    %cst_12 = arith.constant 0.000000e+00 : f32
    %17 = vector.broadcast %cst_12 : f32 to vector<32x128xf32>
    %18 = arith.maximumf %16, %17 : vector<32x128xf32>
    %c0_13 = arith.constant 0 : index
    %c0_14 = arith.constant 0 : index
    %19 = vector.load %arg5[%c0_13, %c0_14] : memref<128x128xf32, #tpu.memory_space<vmem>>, vector<128x128xf32>
    %cst_15 = arith.constant dense<0.000000e+00> : vector<32x128xf32>
    %20 = tpu.matmul %18, %19, %cst_15 {dimension_numbers = #tpu.dot_dimension_numbers<[1], [0], [0], [1], [0, 0, 1, 1], [], []>} : vector<32x128xf32>, vector<128x128xf32>, vector<32x128xf32> -> vector<32x128xf32>
    %21 = arith.maximumf %18, %20 : vector<32x128xf32>
    %c0_16 = arith.constant 0 : index
    %c0_17 = arith.constant 0 : index
    %c0_18 = arith.constant 0 : index
    %22 = vector.load %arg3[%c0_16, %c0_17, %c0_18] : memref<2x32x32xf32, #tpu.memory_space<vmem>>, vector<1x32x32xf32>
    %23 = vector.shape_cast %22 : vector<1x32x32xf32> to vector<32x32xf32>
    %cst_19 = arith.constant dense<0.000000e+00> : vector<32x128xf32>
    %24 = tpu.matmul %23, %21, %cst_19 {dimension_numbers = #tpu.dot_dimension_numbers<[1], [0], [0], [1], [0, 0, 1, 1], [], []>} : vector<32x32xf32>, vector<32x128xf32>, vector<32x128xf32> -> vector<32x128xf32>
    %25 = arith.maximumf %21, %24 : vector<32x128xf32>
    %c0_20 = arith.constant 0 : index
    %c0_21 = arith.constant 0 : index
    %26 = vector.load %arg6[%c0_20, %c0_21] : memref<128x70xf32, #tpu.memory_space<vmem>>, vector<128x70xf32>
    %cst_22 = arith.constant dense<0.000000e+00> : vector<32x70xf32>
    %27 = tpu.matmul %25, %26, %cst_22 {dimension_numbers = #tpu.dot_dimension_numbers<[1], [0], [0], [1], [0, 0, 1, 1], [], []>} : vector<32x128xf32>, vector<128x70xf32>, vector<32x70xf32> -> vector<32x70xf32>
    %c0_23 = arith.constant 0 : index
    %c0_24 = arith.constant 0 : index
    %28 = vector.load %arg7[%c0_23, %c0_24] : memref<32x70xf32, #tpu.memory_space<vmem>>, vector<32x70xf32>
    %29 = arith.mulf %27, %28 : vector<32x70xf32>
    %c0_25 = arith.constant 0 : index
    %c0_26 = arith.constant 0 : index
    %30 = vector.load %arg8[%c0_25, %c0_26] : memref<2x32xf32, #tpu.memory_space<vmem>>, vector<2x32xf32>
    %cst_27 = arith.constant dense<0.000000e+00> : vector<2x70xf32>
    %31 = tpu.matmul %30, %29, %cst_27 {dimension_numbers = #tpu.dot_dimension_numbers<[1], [0], [0], [1], [0, 0, 1, 1], [], []>} : vector<2x32xf32>, vector<32x70xf32>, vector<2x70xf32> -> vector<2x70xf32>
    %c0_28 = arith.constant 0 : index
    %c0_29 = arith.constant 0 : index
    %32 = vector.load %arg9[%c0_28, %c0_29] : memref<70x10xf32, #tpu.memory_space<vmem>>, vector<70x10xf32>
    %cst_30 = arith.constant dense<0.000000e+00> : vector<2x10xf32>
    %33 = tpu.matmul %31, %32, %cst_30 {dimension_numbers = #tpu.dot_dimension_numbers<[1], [0], [0], [1], [0, 0, 1, 1], [], []>} : vector<2x70xf32>, vector<70x10xf32>, vector<2x10xf32> -> vector<2x10xf32>
    %c0_31 = arith.constant 0 : index
    %c0_32 = arith.constant 0 : index
    %34 = vector.load %arg10[%c0_31, %c0_32] : memref<1x10xf32, #tpu.memory_space<vmem>>, vector<1x10xf32>
    %35 = vector.broadcast %34 : vector<1x10xf32> to vector<2x10xf32>
    %36 = arith.addf %33, %35 : vector<2x10xf32>
    %c0_33 = arith.constant 0 : index
    %c0_34 = arith.constant 0 : index
    %37 = vector.load %arg11[%c0_33, %c0_34] : memref<2x10xf32, #tpu.memory_space<vmem>>, vector<2x10xf32>
    tpu.vector_store %arg11[%c0_33, %c0_34], %36 {strides = array<i32>} : memref<2x10xf32, #tpu.memory_space<vmem>>, vector<2x10xf32>,
    return
  }
  func.func @transform_0(%arg0: i32) -> (i32, i32) {
    %c0_i32 = arith.constant 0 : i32
    %c0_i32_0 = arith.constant 0 : i32
    return %arg0, %c0_i32 : i32, i32
  }
  func.func @transform_1(%arg0: i32) -> (i32, i32) {
    %c0_i32 = arith.constant 0 : i32
    %c0_i32_0 = arith.constant 0 : i32
    %c0_i32_1 = arith.constant 0 : i32
    return %c0_i32, %c0_i32_0 : i32, i32
  }
  func.func @transform_2(%arg0: i32) -> (i32, i32, i32) {
    %c0_i32 = arith.constant 0 : i32
    %c0_i32_0 = arith.constant 0 : i32
    %c0_i32_1 = arith.constant 0 : i32
    %c0_i32_2 = arith.constant 0 : i32
    return %c0_i32, %c0_i32_0, %c0_i32_1 : i32, i32, i32
  }
  func.func @transform_3(%arg0: i32) -> (i32, i32) {
    %c0_i32 = arith.constant 0 : i32
    %c0_i32_0 = arith.constant 0 : i32
    %c0_i32_1 = arith.constant 0 : i32
    return %c0_i32, %c0_i32_0 : i32, i32
  }
  func.func @transform_4(%arg0: i32) -> (i32, i32) {
    %c0_i32 = arith.constant 0 : i32
    %c0_i32_0 = arith.constant 0 : i32
    %c0_i32_1 = arith.constant 0 : i32
    return %c0_i32, %c0_i32_0 : i32, i32
  }
  func.func @transform_5(%arg0: i32) -> (i32, i32) {
    %c0_i32 = arith.constant 0 : i32
    %c0_i32_0 = arith.constant 0 : i32
    %c0_i32_1 = arith.constant 0 : i32
    return %c0_i32, %c0_i32_0 : i32, i32
  }
  func.func @transform_6(%arg0: i32) -> (i32, i32) {
    %c0_i32 = arith.constant 0 : i32
    %c0_i32_0 = arith.constant 0 : i32
    %c0_i32_1 = arith.constant 0 : i32
    return %c0_i32, %c0_i32_0 : i32, i32
  }
  func.func @transform_7(%arg0: i32) -> (i32, i32) {
    %c0_i32 = arith.constant 0 : i32
    %c0_i32_0 = arith.constant 0 : i32
    %c0_i32_1 = arith.constant 0 : i32
    return %c0_i32, %c0_i32_0 : i32, i32
  }
  func.func @transform_8(%arg0: i32) -> (i32, i32) {
    %c0_i32 = arith.constant 0 : i32
    %c0_i32_0 = arith.constant 0 : i32
    %c0_i32_1 = arith.constant 0 : i32
    return %c0_i32, %c0_i32_0 : i32, i32
  }
  func.func @transform_9(%arg0: i32) -> (i32, i32) {
    %c0_i32 = arith.constant 0 : i32
    %c0_i32_0 = arith.constant 0 : i32
    %c0_i32_1 = arith.constant 0 : i32
    return %c0_i32, %c0_i32_0 : i32, i32
  }
  func.func @transform_10(%arg0: i32) -> (i32, i32) {
    %c0_i32 = arith.constant 0 : i32
    %c0_i32_0 = arith.constant 0 : i32
    return %arg0, %c0_i32 : i32, i32
  }
}

</mosaic_0001>

<llo_original>
// kernel: cnn_forward.1
$region0: #{cnn_forward.1}
  #allocation0 [shape = 'u32[]', space=smem, size = 0x4, offset = 0x4, fixed_abs, tag = 'smem constant byte address 0x4 - core index']
  #allocation1 [shape = 'u32[144,128]{1,0:T(1,128)}', space=vmem, size = 0x12000, scoped, tag = 'internal scratch']
  %s0 = inlined_call_operand.vmem [shape: f32[32,64], index: 0, kind: input, shape index: {}]
  %s1 = inlined_call_operand.vmem [shape: f32[64,384], index: 1, kind: input, shape index: {}]
  %s2 = inlined_call_operand.vmem [shape: f32[2,32,32], index: 2, kind: input, shape index: {}]
  %s3 = inlined_call_operand.vmem [shape: f32[1,128], index: 3, kind: input, shape index: {}]
  %s4 = inlined_call_operand.vmem [shape: f32[128,128], index: 4, kind: input, shape index: {}]
  %s5 = inlined_call_operand.vmem [shape: f32[128,70], index: 5, kind: input, shape index: {}]
  %s6 = inlined_call_operand.vmem [shape: f32[32,70], index: 6, kind: input, shape index: {}]
  %s7 = inlined_call_operand.vmem [shape: f32[2,32], index: 7, kind: input, shape index: {}]
  %s8 = inlined_call_operand.vmem [shape: f32[70,10], index: 8, kind: input, shape index: {}]
  %s9 = inlined_call_operand.vmem [shape: f32[1,10], index: 9, kind: input, shape index: {}]
  %s10 = inlined_call_operand.hbm [shape: f32[2,10], index: 10, kind: output, shape index: {}]
  %s11 = sld [smem:[#allocation0]]
  $region50: #{cnn_forward.1} parent=0
    _
  %s13 = ssub.s32 1, %s11
  %s14 = scalar_select 0, %s13, %s11
  $region1: #{cnn_forward.1} parent=0
    #allocation2 [shape = 'u8[1024]{0}', space=vmem, size = 0x400, scoped, tag = 'output window, operand 0, single buffered']
    #allocation3 [shape = 's32[1]{0}', space=sflag, size = 0x4, scoped, tag = 'scoped memory for cnn_forward.1']
    %15 = vsyncpa [#allocation3], 0
    // Predicated region
    $region2: #{cnn_forward.1} parent=1 // pred_check
      _
    $region3: #{cnn_forward.1} parent=1 // pred_check_branch
      %17 = sbr.rel (0) target = $region5
    $region4: #{cnn_forward.1} parent=1 // pred_region
      _
    $region5: #{cnn_forward.1} parent=1 // pred_fallthru
      _
    // Predicated region
    $region6: #{cnn_forward.1} parent=1 // pred_check
      _
    $region7: #{cnn_forward.1} parent=1 // pred_check_branch
      %19 = sbr.rel (0) target = $region9
    $region8: #{cnn_forward.1} parent=1 // pred_region
      _
    $region9: #{cnn_forward.1} parent=1 // pred_fallthru
      _
    // Predicated region
    $region10: #{cnn_forward.1} parent=1 // pred_check
      _
    $region11: #{cnn_forward.1} parent=1 // pred_check_branch
      %21 = sbr.rel (0) target = $region13
    $region12: #{cnn_forward.1} parent=1 // pred_region
      _
    $region13: #{cnn_forward.1} parent=1 // pred_fallthru
      _
    // Predicated region
    $region14: #{cnn_forward.1} parent=1 // pred_check
      _
    $region15: #{cnn_forward.1} parent=1 // pred_check_branch
      %23 = sbr.rel (0) target = $region17
    $region16: #{cnn_forward.1} parent=1 // pred_region
      _
    $region17: #{cnn_forward.1} parent=1 // pred_fallthru
      _
    // Predicated region
    $region18: #{cnn_forward.1} parent=1 // pred_check
      _
    $region19: #{cnn_forward.1} parent=1 // pred_check_branch
      %25 = sbr.rel (0) target = $region21
    $region20: #{cnn_forward.1} parent=1 // pred_region
      _
    $region21: #{cnn_forward.1} parent=1 // pred_fallthru
      _
    // Predicated region
    $region22: #{cnn_forward.1} parent=1 // pred_check
      _
    $region23: #{cnn_forward.1} parent=1 // pred_check_branch
      %27 = sbr.rel (0) target = $region25
    $region24: #{cnn_forward.1} parent=1 // pred_region
      _
    $region25: #{cnn_forward.1} parent=1 // pred_fallthru
      _
    // Predicated region
    $region26: #{cnn_forward.1} parent=1 // pred_check
      _
    $region27: #{cnn_forward.1} parent=1 // pred_check_branch
      %29 = sbr.rel (0) target = $region29
    $region28: #{cnn_forward.1} parent=1 // pred_region
      _
    $region29: #{cnn_forward.1} parent=1 // pred_fallthru
      _
    // Predicated region
    $region30: #{cnn_forward.1} parent=1 // pred_check
      _
    $region31: #{cnn_forward.1} parent=1 // pred_check_branch
      %31 = sbr.rel (0) target = $region33
    $region32: #{cnn_forward.1} parent=1 // pred_region
      _
    $region33: #{cnn_forward.1} parent=1 // pred_fallthru
      _
    // Predicated region
    $region34: #{cnn_forward.1} parent=1 // pred_check
      _
    $region35: #{cnn_forward.1} parent=1 // pred_check_branch
      %33 = sbr.rel (0) target = $region37
    $region36: #{cnn_forward.1} parent=1 // pred_region
      _
    $region37: #{cnn_forward.1} parent=1 // pred_fallthru
      _
    // Predicated region
    $region38: #{cnn_forward.1} parent=1 // pred_check
      _
    $region39: #{cnn_forward.1} parent=1 // pred_check_branch
      %35 = sbr.rel (0) target = $region41
    $region40: #{cnn_forward.1} parent=1 // pred_region
      _
    $region41: #{cnn_forward.1} parent=1 // pred_fallthru
      _
    %v36 = vld [vmem:[%s0] sm:$0xff]
    %v37 = vld [vmem:[%s0 + $0x8] sm:$0xff]
    %v38 = vld [vmem:[%s0 + $0x10] sm:$0xff]
    %v39 = vld [vmem:[%s0 + $0x18] sm:$0xff]
    %v40 = vld [vmem:[%s1] sm:$0xff]
    %v41 = vld [vmem:[%s1 + $0x8] sm:$0xff]
    %v42 = vld [vmem:[%s1 + $0x10] sm:$0xff]
    %v43 = vld [vmem:[%s1 + $0x18] sm:$0xff]
    %v44 = vld [vmem:[%s1 + $0x20] sm:$0xff]
    %v45 = vld [vmem:[%s1 + $0x28] sm:$0xff]
    %v46 = vld [vmem:[%s1 + $0x30] sm:$0xff]
    %v47 = vld [vmem:[%s1 + $0x38] sm:$0xff]
    %v48 = vld [vmem:[%s1 + $0x40] sm:$0xff]
    %v49 = vld [vmem:[%s1 + $0x48] sm:$0xff]
    %v50 = vld [vmem:[%s1 + $0x50] sm:$0xff]
    %v51 = vld [vmem:[%s1 + $0x58] sm:$0xff]
    %v52 = vld [vmem:[%s1 + $0x60] sm:$0xff]
    %v53 = vld [vmem:[%s1 + $0x68] sm:$0xff]
    %v54 = vld [vmem:[%s1 + $0x70] sm:$0xff]
    %v55 = vld [vmem:[%s1 + $0x78] sm:$0xff]
    %v56 = vld [vmem:[%s1 + $0x80] sm:$0xff]
    %v57 = vld [vmem:[%s1 + $0x88] sm:$0xff]
    %v58 = vld [vmem:[%s1 + $0x90] sm:$0xff]
    %v59 = vld [vmem:[%s1 + $0x98] sm:$0xff]
    %v60 = vld [vmem:[%s1 + $0xa0] sm:$0xff]
    %v61 = vld [vmem:[%s1 + $0xa8] sm:$0xff]
    %v62 = vld [vmem:[%s1 + $0xb0] sm:$0xff]
    %v63 = vld [vmem:[%s1 + $0xb8] sm:$0xff]
    %vm64 = vcmask 523264
    %v66 = vsel %vm64, %v36, 0
    %v69 = vsel %vm64, %v37, 0
    %v72 = vsel %vm64, %v38, 0
    %v75 = vsel %vm64, %v39, 0
    %77 = vmatprep.subr.mxu0 %v41
    %78 = vmatpush1.msra.mxu0 %v40
    %79 = vmatprep.subr.mxu0 %v44
    %80 = vmatpush1.msra.mxu0 %v43
    %81 = vmatprep.subr.mxu0 %v47
    %82 = vmatpush1.msra.mxu0 %v46
    %83 = vmatprep.subr.mxu0 %v50
    %84 = vmatpush1.msra.mxu0 %v49
    %85 = vmatprep.subr.mxu0 %v53
    %86 = vmatpush1.msra.mxu0 %v52
    %87 = vmatprep.subr.mxu0 %v56
    %88 = vmatpush1.msra.mxu0 %v55
    %89 = vmatprep.subr.mxu0 %v59
    %90 = vmatpush1.msra.mxu0 %v58
    %91 = vmatprep.subr.mxu0 %v62
    %92 = vmatpush1.msra.mxu0 %v61
    %93 = vmatprep.subr.mxu0 0.0
    %94 = vmatpush1.msra.mxu0 0.0
    %95 = vmatprep.subr.mxu0 0.0
    %96 = vmatpush1.msra.mxu0 0.0
    %97 = vmatprep.subr.mxu0 0.0
    %98 = vmatpush1.msra.mxu0 0.0
    %99 = vmatprep.subr.mxu0 0.0
    %100 = vmatpush1.msra.mxu0 0.0
    %101 = vmatprep.subr.mxu0 0.0
    %102 = vmatpush1.msra.mxu0 0.0
    %103 = vmatprep.subr.mxu0 0.0
    %104 = vmatpush1.msra.mxu0 0.0
    %105 = vmatprep.subr.mxu0 0.0
    %106 = vmatpush1.msra.mxu0 0.0
    %107 = vmatprep.subr.mxu0 0.0
    %108 = vmatpush1.msra.mxu0 0.0
    %109 = vmatprep.subr.mxu0 0.0
    %110 = vmatpush1.msra.mxu0 0.0
    %111 = vmatprep.subr.mxu0 0.0
    %112 = vmatpush1.msra.mxu0 0.0
    %113 = vmatprep.subr.mxu0 0.0
    %114 = vmatpush1.msra.mxu0 0.0
    %115 = vmatprep.subr.mxu0 0.0
    %116 = vmatpush1.msra.mxu0 0.0
    %117 = vmatprep.subr.mxu0 0.0
    %118 = vmatpush1.msra.mxu0 0.0
    %119 = vmatprep.subr.mxu0 0.0
    %120 = vmatpush1.msra.mxu0 0.0
    %121 = vmatprep.subr.mxu0 0.0
    %122 = vmatpush1.msra.mxu0 0.0
    %123 = vmatprep.subr.mxu0 0.0
    %124 = vmatpush1.msra.mxu0 0.0
    %125 = vmatprep.subr.mxu0 0.0
    %126 = vmatpush1.msra.mxu0 0.0
    %127 = vmatprep.subr.mxu0 0.0
    %128 = vmatpush1.msra.mxu0 0.0
    %129 = vmatprep.subr.mxu0 0.0
    %130 = vmatpush1.msra.mxu0 0.0
    %131 = vmatprep.subr.mxu0 0.0
    %132 = vmatpush1.msra.mxu0 0.0
    %133 = vmatprep.subr.mxu0 0.0
    %134 = vmatpush1.msra.mxu0 0.0
    %135 = vmatprep.subr.mxu0 0.0
    %136 = vmatpush1.msra.mxu0 0.0
    %137 = vmatprep.subr.mxu0 0.0
    %138 = vmatpush1.msra.mxu0 0.0
    %139 = vmatprep.subr.mxu0 0.0
    %140 = vmatpush1.msra.mxu0 0.0
    %141 = vmatprep.mubr.f32.mxu0 0.0
    %142 = vmatmul.mubr.f32.gmra.mrb[0].mxu0 %v66
    %v143 = vpop.f32.mrb[0].mxu0
    %v144 = vadd.f32 0.0, %v143
    %v145 = vpop.f32.mrb[0].mxu0
    %v146 = vadd.f32 0.0, %v145
    %147 = vmatprep.mubr.f32.mxu0 0.0
    %148 = vmatmul.mubr.f32.gmra.mrb[0].mxu0 %v69
    %v149 = vpop.f32.mrb[0].mxu0
    %v150 = vadd.f32 0.0, %v149
    %v151 = vpop.f32.mrb[0].mxu0
    %v152 = vadd.f32 0.0, %v151
    %153 = vmatprep.mubr.f32.mxu0 0.0
    %154 = vmatmul.mubr.f32.gmra.mrb[0].mxu0 %v72
    %v155 = vpop.f32.mrb[0].mxu0
    %v156 = vadd.f32 0.0, %v155
    %v157 = vpop.f32.mrb[0].mxu0
    %v158 = vadd.f32 0.0, %v157
    %159 = vmatprep.mubr.f32.mxu0 0.0
    %160 = vmatmul.mubr.f32.gmra.mrb[0].mxu0 %v75
    %v161 = vpop.f32.mrb[0].mxu0
    %v162 = vadd.f32 0.0, %v161
    %v163 = vpop.f32.mrb[0].mxu0
    %v164 = vadd.f32 0.0, %v163
    %165 = vdwg.mxu0
    %166 = vmatprep.subr.mxu0 0.0
    %167 = vmatpush1.msra.mxu0 %v42
    %168 = vmatprep.subr.mxu0 0.0
    %169 = vmatpush1.msra.mxu0 %v45
    %170 = vmatprep.subr.mxu0 0.0
    %171 = vmatpush1.msra.mxu0 %v48
    %172 = vmatprep.subr.mxu0 0.0
    %173 = vmatpush1.msra.mxu0 %v51
    %174 = vmatprep.subr.mxu0 0.0
    %175 = vmatpush1.msra.mxu0 %v54
    %176 = vmatprep.subr.mxu0 0.0
    %177 = vmatpush1.msra.mxu0 %v57
    %178 = vmatprep.subr.mxu0 0.0
    %179 = vmatpush1.msra.mxu0 %v60
    %180 = vmatprep.subr.mxu0 0.0
    %181 = vmatpush1.msra.mxu0 %v63
    %182 = vmatprep.subr.mxu0 0.0
    %183 = vmatpush1.msra.mxu0 0.0
    %184 = vmatprep.subr.mxu0 0.0
    %185 = vmatpush1.msra.mxu0 0.0
    %186 = vmatprep.subr.mxu0 0.0
    %187 = vmatpush1.msra.mxu0 0.0
    %188 = vmatprep.subr.mxu0 0.0
    %189 = vmatpush1.msra.mxu0 0.0
    %190 = vmatprep.subr.mxu0 0.0
    %191 = vmatpush1.msra.mxu0 0.0
    %192 = vmatprep.subr.mxu0 0.0
    %193 = vmatpush1.msra.mxu0 0.0
    %194 = vmatprep.subr.mxu0 0.0
    %195 = vmatpush1.msra.mxu0 0.0
    %196 = vmatprep.subr.mxu0 0.0
    %197 = vmatpush1.msra.mxu0 0.0
    %198 = vmatprep.subr.mxu0 0.0
    %199 = vmatpush1.msra.mxu0 0.0
    %200 = vmatprep.subr.mxu0 0.0
    %201 = vmatpush1.msra.mxu0 0.0
    %202 = vmatprep.subr.mxu0 0.0
    %203 = vmatpush1.msra.mxu0 0.0
    %204 = vmatprep.subr.mxu0 0.0
    %205 = vmatpush1.msra.mxu0 0.0
    %206 = vmatprep.subr.mxu0 0.0
    %207 = vmatpush1.msra.mxu0 0.0
    %208 = vmatprep.subr.mxu0 0.0
    %209 = vmatpush1.msra.mxu0 0.0
    %210 = vmatprep.subr.mxu0 0.0
    %211 = vmatpush1.msra.mxu0 0.0
    %212 = vmatprep.subr.mxu0 0.0
    %213 = vmatpush1.msra.mxu0 0.0
    %214 = vmatprep.subr.mxu0 0.0
    %215 = vmatpush1.msra.mxu0 0.0
    %216 = vmatprep.subr.mxu0 0.0
    %217 = vmatpush1.msra.mxu0 0.0
    %218 = vmatprep.subr.mxu0 0.0
    %219 = vmatpush1.msra.mxu0 0.0
    %220 = vmatprep.subr.mxu0 0.0
    %221 = vmatpush1.msra.mxu0 0.0
    %222 = vmatprep.subr.mxu0 0.0
    %223 = vmatpush1.msra.mxu0 0.0
    %224 = vmatprep.subr.mxu0 0.0
    %225 = vmatpush1.msra.mxu0 0.0
    %226 = vmatprep.subr.mxu0 0.0
    %227 = vmatpush1.msra.mxu0 0.0
    %228 = vmatprep.subr.mxu0 0.0
    %229 = vmatpush1.msra.mxu0 0.0
    %230 = vmatprep.mubr.f32.mxu0 0.0
    %231 = vmatmul.mubr.f32.gmra.mrb[0].mxu0 %v66
    %v232 = vpop.f32.mrb[0].mxu0
    %v233 = vadd.f32 0.0, %v232
    %v234 = vpop.f32.mrb[0].mxu0
    %235 = vmatprep.mubr.f32.mxu0 0.0
    %236 = vmatmul.mubr.f32.gmra.mrb[0].mxu0 %v69
    %v237 = vpop.f32.mrb[0].mxu0
    %v238 = vadd.f32 0.0, %v237
    %v239 = vpop.f32.mrb[0].mxu0
    %240 = vmatprep.mubr.f32.mxu0 0.0
    %241 = vmatmul.mubr.f32.gmra.mrb[0].mxu0 %v72
    %v242 = vpop.f32.mrb[0].mxu0
    %v243 = vadd.f32 0.0, %v242
    %v244 = vpop.f32.mrb[0].mxu0
    %245 = vmatprep.mubr.f32.mxu0 0.0
    %246 = vmatmul.mubr.f32.gmra.mrb[0].mxu0 %v75
    %v247 = vpop.f32.mrb[0].mxu0
    %v248 = vadd.f32 0.0, %v247
    %v249 = vpop.f32.mrb[0].mxu0
    %250 = vdwg.mxu0
    %v251 = vld [vmem:[%s2] sm:$0xff]
    %v252 = vld [vmem:[%s2 + $0x8] sm:$0xff]
    %v253 = vld [vmem:[%s2 + $0x10] sm:$0xff]
    %v254 = vld [vmem:[%s2 + $0x18] sm:$0xff]
    %vm255 = vcmask 261120
    %v257 = vsel %vm255, %v251, 0
    %v260 = vsel %vm255, %v252, 0
    %v263 = vsel %vm255, %v253, 0
    %v266 = vsel %vm255, %v254, 0
    %268 = vmatprep.subr.mxu0 0.0
    %269 = vmatpush1.msra.mxu0 %v146
    %270 = vmatprep.subr.mxu0 0.0
    %271 = vmatpush1.msra.mxu0 %v152
    %272 = vmatprep.subr.mxu0 0.0
    %273 = vmatpush1.msra.mxu0 %v158
    %274 = vmatprep.subr.mxu0 0.0
    %275 = vmatpush1.msra.mxu0 %v164
    %276 = vmatprep.subr.mxu0 0.0
    %277 = vmatpush1.msra.mxu0 0.0
    %278 = vmatprep.subr.mxu0 0.0
    %279 = vmatpush1.msra.mxu0 0.0
    %280 = vmatprep.subr.mxu0 0.0
    %281 = vmatpush1.msra.mxu0 0.0
    %282 = vmatprep.subr.mxu0 0.0
    %283 = vmatpush1.msra.mxu0 0.0
    %284 = vmatprep.subr.mxu0 0.0
    %285 = vmatpush1.msra.mxu0 0.0
    %286 = vmatprep.subr.mxu0 0.0
    %287 = vmatpush1.msra.mxu0 0.0
    %288 = vmatprep.subr.mxu0 0.0
    %289 = vmatpush1.msra.mxu0 0.0
    %290 = vmatprep.subr.mxu0 0.0
    %291 = vmatpush1.msra.mxu0 0.0
    %292 = vmatprep.subr.mxu0 0.0
    %293 = vmatpush1.msra.mxu0 0.0
    %294 = vmatprep.subr.mxu0 0.0
    %295 = vmatpush1.msra.mxu0 0.0
    %296 = vmatprep.subr.mxu0 0.0
    %297 = vmatpush1.msra.mxu0 0.0
    %298 = vmatprep.subr.mxu0 0.0
    %299 = vmatpush1.msra.mxu0 0.0
    %300 = vmatprep.subr.mxu0 0.0
    %301 = vmatpush1.msra.mxu0 0.0
    %302 = vmatprep.subr.mxu0 0.0
    %303 = vmatpush1.msra.mxu0 0.0
    %304 = vmatprep.subr.mxu0 0.0
    %305 = vmatpush1.msra.mxu0 0.0
    %306 = vmatprep.subr.mxu0 0.0
    %307 = vmatpush1.msra.mxu0 0.0
    %308 = vmatprep.subr.mxu0 0.0
    %309 = vmatpush1.msra.mxu0 0.0
    %310 = vmatprep.subr.mxu0 0.0
    %311 = vmatpush1.msra.mxu0 0.0
    %312 = vmatprep.subr.mxu0 0.0
    %313 = vmatpush1.msra.mxu0 0.0
    %314 = vmatprep.subr.mxu0 0.0
    %315 = vmatpush1.msra.mxu0 0.0
    %316 = vmatprep.subr.mxu0 0.0
    %317 = vmatpush1.msra.mxu0 0.0
    %318 = vmatprep.subr.mxu0 0.0
    %319 = vmatpush1.msra.mxu0 0.0
    %320 = vmatprep.subr.mxu0 0.0
    %321 = vmatpush1.msra.mxu0 0.0
    %322 = vmatprep.subr.mxu0 0.0
    %323 = vmatpush1.msra.mxu0 0.0
    %324 = vmatprep.subr.mxu0 0.0
    %325 = vmatpush1.msra.mxu0 0.0
    %326 = vmatprep.subr.mxu0 0.0
    %327 = vmatpush1.msra.mxu0 0.0
    %328 = vmatprep.subr.mxu0 0.0
    %329 = vmatpush1.msra.mxu0 0.0
    %330 = vmatprep.subr.mxu0 0.0
    %331 = vmatpush1.msra.mxu0 0.0
    %332 = vmatprep.mubr.f32.mxu0 0.0
    %333 = vmatmul.mubr.f32.gmra.mrb[0].mxu0 %v257
    %v334 = vpop.f32.mrb[0].mxu0
    %v335 = vadd.f32 0.0, %v334
    %v336 = vpop.f32.mrb[0].mxu0
    %337 = vmatprep.mubr.f32.mxu0 0.0
    %338 = vmatmul.mubr.f32.gmra.mrb[0].mxu0 %v260
    %v339 = vpop.f32.mrb[0].mxu0
    %v340 = vadd.f32 0.0, %v339
    %v341 = vpop.f32.mrb[0].mxu0
    %342 = vmatprep.mubr.f32.mxu0 0.0
    %343 = vmatmul.mubr.f32.gmra.mrb[0].mxu0 %v263
    %v344 = vpop.f32.mrb[0].mxu0
    %v345 = vadd.f32 0.0, %v344
    %v346 = vpop.f32.mrb[0].mxu0
    %347 = vmatprep.mubr.f32.mxu0 0.0
    %348 = vmatmul.mubr.f32.gmra.mrb[0].mxu0 %v266
    %v349 = vpop.f32.mrb[0].mxu0
    %v350 = vadd.f32 0.0, %v349
    %v351 = vpop.f32.mrb[0].mxu0
    %352 = vdwg.mxu0
    %v353 = vadd.f32 %v144, %v335
    %v354 = vadd.f32 %v150, %v340
    %v355 = vadd.f32 %v156, %v345
    %v356 = vadd.f32 %v162, %v350
    %s357 = scalar_lea.vmem %s2, 32
    %v358 = vld [vmem:[%s357] sm:$0xff]
    %v359 = vld [vmem:[%s357 + $0x8] sm:$0xff]
    %v360 = vld [vmem:[%s357 + $0x10] sm:$0xff]
    %v361 = vld [vmem:[%s357 + $0x18] sm:$0xff]
    %v363 = vsel %vm255, %v358, 0
    %v366 = vsel %vm255, %v359, 0
    %v369 = vsel %vm255, %v360, 0
    %v372 = vsel %vm255, %v361, 0
    %374 = vmatprep.subr.mxu0 0.0
    %375 = vmatpush1.msra.mxu0 %v233
    %376 = vmatprep.subr.mxu0 0.0
    %377 = vmatpush1.msra.mxu0 %v238
    %378 = vmatprep.subr.mxu0 0.0
    %379 = vmatpush1.msra.mxu0 %v243
    %380 = vmatprep.subr.mxu0 0.0
    %381 = vmatpush1.msra.mxu0 %v248
    %382 = vmatprep.subr.mxu0 0.0
    %383 = vmatpush1.msra.mxu0 0.0
    %384 = vmatprep.subr.mxu0 0.0
    %385 = vmatpush1.msra.mxu0 0.0
    %386 = vmatprep.subr.mxu0 0.0
    %387 = vmatpush1.msra.mxu0 0.0
    %388 = vmatprep.subr.mxu0 0.0
    %389 = vmatpush1.msra.mxu0 0.0
    %390 = vmatprep.subr.mxu0 0.0
    %391 = vmatpush1.msra.mxu0 0.0
    %392 = vmatprep.subr.mxu0 0.0
    %393 = vmatpush1.msra.mxu0 0.0
    %394 = vmatprep.subr.mxu0 0.0
    %395 = vmatpush1.msra.mxu0 0.0
    %396 = vmatprep.subr.mxu0 0.0
    %397 = vmatpush1.msra.mxu0 0.0
    %398 = vmatprep.subr.mxu0 0.0
    %399 = vmatpush1.msra.mxu0 0.0
    %400 = vmatprep.subr.mxu0 0.0
    %401 = vmatpush1.msra.mxu0 0.0
    %402 = vmatprep.subr.mxu0 0.0
    %403 = vmatpush1.msra.mxu0 0.0
    %404 = vmatprep.subr.mxu0 0.0
    %405 = vmatpush1.msra.mxu0 0.0
    %406 = vmatprep.subr.mxu0 0.0
    %407 = vmatpush1.msra.mxu0 0.0
    %408 = vmatprep.subr.mxu0 0.0
    %409 = vmatpush1.msra.mxu0 0.0
    %410 = vmatprep.subr.mxu0 0.0
    %411 = vmatpush1.msra.mxu0 0.0
    %412 = vmatprep.subr.mxu0 0.0
    %413 = vmatpush1.msra.mxu0 0.0
    %414 = vmatprep.subr.mxu0 0.0
    %415 = vmatpush1.msra.mxu0 0.0
    %416 = vmatprep.subr.mxu0 0.0
    %417 = vmatpush1.msra.mxu0 0.0
    %418 = vmatprep.subr.mxu0 0.0
    %419 = vmatpush1.msra.mxu0 0.0
    %420 = vmatprep.subr.mxu0 0.0
    %421 = vmatpush1.msra.mxu0 0.0
    %422 = vmatprep.subr.mxu0 0.0
    %423 = vmatpush1.msra.mxu0 0.0
    %424 = vmatprep.subr.mxu0 0.0
    %425 = vmatpush1.msra.mxu0 0.0
    %426 = vmatprep.subr.mxu0 0.0
    %427 = vmatpush1.msra.mxu0 0.0
    %428 = vmatprep.subr.mxu0 0.0
    %429 = vmatpush1.msra.mxu0 0.0
    %430 = vmatprep.subr.mxu0 0.0
    %431 = vmatpush1.msra.mxu0 0.0
    %432 = vmatprep.subr.mxu0 0.0
    %433 = vmatpush1.msra.mxu0 0.0
    %434 = vmatprep.subr.mxu0 0.0
    %435 = vmatpush1.msra.mxu0 0.0
    %436 = vmatprep.subr.mxu0 0.0
    %437 = vmatpush1.msra.mxu0 0.0
    %438 = vmatprep.mubr.f32.mxu0 0.0
    %439 = vmatmul.mubr.f32.gmra.mrb[0].mxu0 %v363
    %v440 = vpop.f32.mrb[0].mxu0
    %v441 = vadd.f32 0.0, %v440
    %v442 = vpop.f32.mrb[0].mxu0
    %443 = vmatprep.mubr.f32.mxu0 0.0
    %444 = vmatmul.mubr.f32.gmra.mrb[0].mxu0 %v366
    %v445 = vpop.f32.mrb[0].mxu0
    %v446 = vadd.f32 0.0, %v445
    %v447 = vpop.f32.mrb[0].mxu0
    %448 = vmatprep.mubr.f32.mxu0 0.0
    %449 = vmatmul.mubr.f32.gmra.mrb[0].mxu0 %v369
    %v450 = vpop.f32.mrb[0].mxu0
    %v451 = vadd.f32 0.0, %v450
    %v452 = vpop.f32.mrb[0].mxu0
    %453 = vmatprep.mubr.f32.mxu0 0.0
    %454 = vmatmul.mubr.f32.gmra.mrb[0].mxu0 %v372
    %v455 = vpop.f32.mrb[0].mxu0
    %v456 = vadd.f32 0.0, %v455
    %v457 = vpop.f32.mrb[0].mxu0
    %458 = vdwg.mxu0
    %v459 = vadd.f32 %v353, %v441
    %v460 = vadd.f32 %v354, %v446
    %v461 = vadd.f32 %v355, %v451
    %v462 = vadd.f32 %v356, %v456
    %v463 = vld [vmem:[%s3] sm:$0x1]
    %v465 = vlaneseq
    %v466 = vshrl.u32 %v465, 7
    %v467 = vsub.s32 0, %v466
    %v468 = vrot.slane %v463, %v467
    %v470 = vadd.f32 %v459, %v468
    %v471 = vadd.f32 %v460, %v468
    %v472 = vadd.f32 %v461, %v468
    %v473 = vadd.f32 %v462, %v468
    %v474 = vmax.f32 %v470, 0.0
    %v475 = vmax.f32 %v471, 0.0
    %v476 = vmax.f32 %v472, 0.0
    %v477 = vmax.f32 %v473, 0.0
    %v478 = vld [vmem:[%s4] sm:$0xff]
    %v479 = vld [vmem:[%s4 + $0x8] sm:$0xff]
    %v480 = vld [vmem:[%s4 + $0x10] sm:$0xff]
    %v481 = vld [vmem:[%s4 + $0x18] sm:$0xff]
    %v482 = vld [vmem:[%s4 + $0x20] sm:$0xff]
    %v483 = vld [vmem:[%s4 + $0x28] sm:$0xff]
    %v484 = vld [vmem:[%s4 + $0x30] sm:$0xff]
    %v485 = vld [vmem:[%s4 + $0x38] sm:$0xff]
    %v486 = vld [vmem:[%s4 + $0x40] sm:$0xff]
    %v487 = vld [vmem:[%s4 + $0x48] sm:$0xff]
    %v488 = vld [vmem:[%s4 + $0x50] sm:$0xff]
    %v489 = vld [vmem:[%s4 + $0x58] sm:$0xff]
    %v490 = vld [vmem:[%s4 + $0x60] sm:$0xff]
    %v491 = vld [vmem:[%s4 + $0x68] sm:$0xff]
    %v492 = vld [vmem:[%s4 + $0x70] sm:$0xff]
    %v493 = vld [vmem:[%s4 + $0x78] sm:$0xff]
    %494 = vmatprep.subr.mxu0 0.0
    %495 = vmatpush1.msra.mxu0 %v478
    %496 = vmatprep.subr.mxu0 0.0
    %497 = vmatpush1.msra.mxu0 %v479
    %498 = vmatprep.subr.mxu0 0.0
    %499 = vmatpush1.msra.mxu0 %v480
    %500 = vmatprep.subr.mxu0 0.0
    %501 = vmatpush1.msra.mxu0 %v481
    %502 = vmatprep.subr.mxu0 0.0
    %503 = vmatpush1.msra.mxu0 %v482
    %504 = vmatprep.subr.mxu0 0.0
    %505 = vmatpush1.msra.mxu0 %v483
    %506 = vmatprep.subr.mxu0 0.0
    %507 = vmatpush1.msra.mxu0 %v484
    %508 = vmatprep.subr.mxu0 0.0
    %509 = vmatpush1.msra.mxu0 %v485
    %510 = vmatprep.subr.mxu0 0.0
    %511 = vmatpush1.msra.mxu0 %v486
    %512 = vmatprep.subr.mxu0 0.0
    %513 = vmatpush1.msra.mxu0 %v487
    %514 = vmatprep.subr.mxu0 0.0
    %515 = vmatpush1.msra.mxu0 %v488
    %516 = vmatprep.subr.mxu0 0.0
    %517 = vmatpush1.msra.mxu0 %v489
    %518 = vmatprep.subr.mxu0 0.0
    %519 = vmatpush1.msra.mxu0 %v490
    %520 = vmatprep.subr.mxu0 0.0
    %521 = vmatpush1.msra.mxu0 %v491
    %522 = vmatprep.subr.mxu0 0.0
    %523 = vmatpush1.msra.mxu0 %v492
    %524 = vmatprep.subr.mxu0 0.0
    %525 = vmatpush1.msra.mxu0 %v493
    %526 = vmatprep.subr.mxu0 0.0
    %527 = vmatpush1.msra.mxu0 0.0
    %528 = vmatprep.subr.mxu0 0.0
    %529 = vmatpush1.msra.mxu0 0.0
    %530 = vmatprep.subr.mxu0 0.0
    %531 = vmatpush1.msra.mxu0 0.0
    %532 = vmatprep.subr.mxu0 0.0
    %533 = vmatpush1.msra.mxu0 0.0
    %534 = vmatprep.subr.mxu0 0.0
    %535 = vmatpush1.msra.mxu0 0.0
    %536 = vmatprep.subr.mxu0 0.0
    %537 = vmatpush1.msra.mxu0 0.0
    %538 = vmatprep.subr.mxu0 0.0
    %539 = vmatpush1.msra.mxu0 0.0
    %540 = vmatprep.subr.mxu0 0.0
    %541 = vmatpush1.msra.mxu0 0.0
    %542 = vmatprep.subr.mxu0 0.0
    %543 = vmatpush1.msra.mxu0 0.0
    %544 = vmatprep.subr.mxu0 0.0
    %545 = vmatpush1.msra.mxu0 0.0
    %546 = vmatprep.subr.mxu0 0.0
    %547 = vmatpush1.msra.mxu0 0.0
    %548 = vmatprep.subr.mxu0 0.0
    %549 = vmatpush1.msra.mxu0 0.0
    %550 = vmatprep.subr.mxu0 0.0
    %551 = vmatpush1.msra.mxu0 0.0
    %552 = vmatprep.subr.mxu0 0.0
    %553 = vmatpush1.msra.mxu0 0.0
    %554 = vmatprep.subr.mxu0 0.0
    %555 = vmatpush1.msra.mxu0 0.0
    %556 = vmatprep.subr.mxu0 0.0
    %557 = vmatpush1.msra.mxu0 0.0
    %558 = vmatprep.mubr.f32.mxu0 0.0
    %559 = vmatmul.mubr.f32.gmra.mrb[0].mxu0 %v474
    %v560 = vpop.f32.mrb[0].mxu0
    %v561 = vadd.f32 0.0, %v560
    %v562 = vpop.f32.mrb[0].mxu0
    %563 = vmatprep.mubr.f32.mxu0 0.0
    %564 = vmatmul.mubr.f32.gmra.mrb[0].mxu0 %v475
    %v565 = vpop.f32.mrb[0].mxu0
    %v566 = vadd.f32 0.0, %v565
    %v567 = vpop.f32.mrb[0].mxu0
    %568 = vmatprep.mubr.f32.mxu0 0.0
    %569 = vmatmul.mubr.f32.gmra.mrb[0].mxu0 %v476
    %v570 = vpop.f32.mrb[0].mxu0
    %v571 = vadd.f32 0.0, %v570
    %v572 = vpop.f32.mrb[0].mxu0
    %573 = vmatprep.mubr.f32.mxu0 0.0
    %574 = vmatmul.mubr.f32.gmra.mrb[0].mxu0 %v477
    %v575 = vpop.f32.mrb[0].mxu0
    %v576 = vadd.f32 0.0, %v575
    %v577 = vpop.f32.mrb[0].mxu0
    %578 = vdwg.mxu0
    %v579 = vmax.f32 %v474, %v561
    %v580 = vmax.f32 %v475, %v566
    %v581 = vmax.f32 %v476, %v571
    %v582 = vmax.f32 %v477, %v576
    %583 = vmatprep.subr.mxu0 0.0
    %584 = vmatpush1.msra.mxu0 %v579
    %585 = vmatprep.subr.mxu0 0.0
    %586 = vmatpush1.msra.mxu0 %v580
    %587 = vmatprep.subr.mxu0 0.0
    %588 = vmatpush1.msra.mxu0 %v581
    %589 = vmatprep.subr.mxu0 0.0
    %590 = vmatpush1.msra.mxu0 %v582
    %591 = vmatprep.subr.mxu0 0.0
    %592 = vmatpush1.msra.mxu0 0.0
    %593 = vmatprep.subr.mxu0 0.0
    %594 = vmatpush1.msra.mxu0 0.0
    %595 = vmatprep.subr.mxu0 0.0
    %596 = vmatpush1.msra.mxu0 0.0
    %597 = vmatprep.subr.mxu0 0.0
    %598 = vmatpush1.msra.mxu0 0.0
    %599 = vmatprep.subr.mxu0 0.0
    %600 = vmatpush1.msra.mxu0 0.0
    %601 = vmatprep.subr.mxu0 0.0
    %602 = vmatpush1.msra.mxu0 0.0
    %603 = vmatprep.subr.mxu0 0.0
    %604 = vmatpush1.msra.mxu0 0.0
    %605 = vmatprep.subr.mxu0 0.0
    %606 = vmatpush1.msra.mxu0 0.0
    %607 = vmatprep.subr.mxu0 0.0
    %608 = vmatpush1.msra.mxu0 0.0
    %609 = vmatprep.subr.mxu0 0.0
    %610 = vmatpush1.msra.mxu0 0.0
    %611 = vmatprep.subr.mxu0 0.0
    %612 = vmatpush1.msra.mxu0 0.0
    %613 = vmatprep.subr.mxu0 0.0
    %614 = vmatpush1.msra.mxu0 0.0
    %615 = vmatprep.subr.mxu0 0.0
    %616 = vmatpush1.msra.mxu0 0.0
    %617 = vmatprep.subr.mxu0 0.0
    %618 = vmatpush1.msra.mxu0 0.0
    %619 = vmatprep.subr.mxu0 0.0
    %620 = vmatpush1.msra.mxu0 0.0
    %621 = vmatprep.subr.mxu0 0.0
    %622 = vmatpush1.msra.mxu0 0.0
    %623 = vmatprep.subr.mxu0 0.0
    %624 = vmatpush1.msra.mxu0 0.0
    %625 = vmatprep.subr.mxu0 0.0
    %626 = vmatpush1.msra.mxu0 0.0
    %627 = vmatprep.subr.mxu0 0.0
    %628 = vmatpush1.msra.mxu0 0.0
    %629 = vmatprep.subr.mxu0 0.0
    %630 = vmatpush1.msra.mxu0 0.0
    %631 = vmatprep.subr.mxu0 0.0
    %632 = vmatpush1.msra.mxu0 0.0
    %633 = vmatprep.subr.mxu0 0.0
    %634 = vmatpush1.msra.mxu0 0.0
    %635 = vmatprep.subr.mxu0 0.0
    %636 = vmatpush1.msra.mxu0 0.0
    %637 = vmatprep.subr.mxu0 0.0
    %638 = vmatpush1.msra.mxu0 0.0
    %639 = vmatprep.subr.mxu0 0.0
    %640 = vmatpush1.msra.mxu0 0.0
    %641 = vmatprep.subr.mxu0 0.0
    %642 = vmatpush1.msra.mxu0 0.0
    %643 = vmatprep.subr.mxu0 0.0
    %644 = vmatpush1.msra.mxu0 0.0
    %645 = vmatprep.subr.mxu0 0.0
    %646 = vmatpush1.msra.mxu0 0.0
    %647 = vmatprep.mubr.f32.mxu0 0.0
    %648 = vmatmul.mubr.f32.gmra.mrb[0].mxu0 %v257
    %v649 = vpop.f32.mrb[0].mxu0
    %v650 = vadd.f32 0.0, %v649
    %v651 = vpop.f32.mrb[0].mxu0
    %652 = vmatprep.mubr.f32.mxu0 0.0
    %653 = vmatmul.mubr.f32.gmra.mrb[0].mxu0 %v260
    %v654 = vpop.f32.mrb[0].mxu0
    %v655 = vadd.f32 0.0, %v654
    %v656 = vpop.f32.mrb[0].mxu0
    %657 = vmatprep.mubr.f32.mxu0 0.0
    %658 = vmatmul.mubr.f32.gmra.mrb[0].mxu0 %v263
    %v659 = vpop.f32.mrb[0].mxu0
    %v660 = vadd.f32 0.0, %v659
    %v661 = vpop.f32.mrb[0].mxu0
    %662 = vmatprep.mubr.f32.mxu0 0.0
    %663 = vmatmul.mubr.f32.gmra.mrb[0].mxu0 %v266
    %v664 = vpop.f32.mrb[0].mxu0
    %v665 = vadd.f32 0.0, %v664
    %v666 = vpop.f32.mrb[0].mxu0
    %667 = vdwg.mxu0
    %v668 = vmax.f32 %v579, %v650
    %v669 = vmax.f32 %v580, %v655
    %v670 = vmax.f32 %v581, %v660
    %v671 = vmax.f32 %v582, %v665
    %v672 = vld [vmem:[%s5] sm:$0xff]
    %v673 = vld [vmem:[%s5 + $0x8] sm:$0xff]
    %v674 = vld [vmem:[%s5 + $0x10] sm:$0xff]
    %v675 = vld [vmem:[%s5 + $0x18] sm:$0xff]
    %v676 = vld [vmem:[%s5 + $0x20] sm:$0xff]
    %v677 = vld [vmem:[%s5 + $0x28] sm:$0xff]
    %v678 = vld [vmem:[%s5 + $0x30] sm:$0xff]
    %v679 = vld [vmem:[%s5 + $0x38] sm:$0xff]
    %v680 = vld [vmem:[%s5 + $0x40] sm:$0xff]
    %v681 = vld [vmem:[%s5 + $0x48] sm:$0xff]
    %v682 = vld [vmem:[%s5 + $0x50] sm:$0xff]
    %v683 = vld [vmem:[%s5 + $0x58] sm:$0xff]
    %v684 = vld [vmem:[%s5 + $0x60] sm:$0xff]
    %v685 = vld [vmem:[%s5 + $0x68] sm:$0xff]
    %v686 = vld [vmem:[%s5 + $0x70] sm:$0xff]
    %v687 = vld [vmem:[%s5 + $0x78] sm:$0xff]
    %688 = vmatprep.subr.mxu0 0.0
    %689 = vmatpush1.msra.mxu0 %v672
    %690 = vmatprep.subr.mxu0 0.0
    %691 = vmatpush1.msra.mxu0 %v673
    %692 = vmatprep.subr.mxu0 0.0
    %693 = vmatpush1.msra.mxu0 %v674
    %694 = vmatprep.subr.mxu0 0.0
    %695 = vmatpush1.msra.mxu0 %v675
    %696 = vmatprep.subr.mxu0 0.0
    %697 = vmatpush1.msra.mxu0 %v676
    %698 = vmatprep.subr.mxu0 0.0
    %699 = vmatpush1.msra.mxu0 %v677
    %700 = vmatprep.subr.mxu0 0.0
    %701 = vmatpush1.msra.mxu0 %v678
    %702 = vmatprep.subr.mxu0 0.0
    %703 = vmatpush1.msra.mxu0 %v679
    %704 = vmatprep.subr.mxu0 0.0
    %705 = vmatpush1.msra.mxu0 %v680
    %706 = vmatprep.subr.mxu0 0.0
    %707 = vmatpush1.msra.mxu0 %v681
    %708 = vmatprep.subr.mxu0 0.0
    %709 = vmatpush1.msra.mxu0 %v682
    %710 = vmatprep.subr.mxu0 0.0
    %711 = vmatpush1.msra.mxu0 %v683
    %712 = vmatprep.subr.mxu0 0.0
    %713 = vmatpush1.msra.mxu0 %v684
    %714 = vmatprep.subr.mxu0 0.0
    %715 = vmatpush1.msra.mxu0 %v685
    %716 = vmatprep.subr.mxu0 0.0
    %717 = vmatpush1.msra.mxu0 %v686
    %718 = vmatprep.subr.mxu0 0.0
    %719 = vmatpush1.msra.mxu0 %v687
    %720 = vmatprep.subr.mxu0 0.0
    %721 = vmatpush1.msra.mxu0 0.0
    %722 = vmatprep.subr.mxu0 0.0
    %723 = vmatpush1.msra.mxu0 0.0
    %724 = vmatprep.subr.mxu0 0.0
    %725 = vmatpush1.msra.mxu0 0.0
    %726 = vmatprep.subr.mxu0 0.0
    %727 = vmatpush1.msra.mxu0 0.0
    %728 = vmatprep.subr.mxu0 0.0
    %729 = vmatpush1.msra.mxu0 0.0
    %730 = vmatprep.subr.mxu0 0.0
    %731 = vmatpush1.msra.mxu0 0.0
    %732 = vmatprep.subr.mxu0 0.0
    %733 = vmatpush1.msra.mxu0 0.0
    %734 = vmatprep.subr.mxu0 0.0
    %735 = vmatpush1.msra.mxu0 0.0
    %736 = vmatprep.subr.mxu0 0.0
    %737 = vmatpush1.msra.mxu0 0.0
    %738 = vmatprep.subr.mxu0 0.0
    %739 = vmatpush1.msra.mxu0 0.0
    %740 = vmatprep.subr.mxu0 0.0
    %741 = vmatpush1.msra.mxu0 0.0
    %742 = vmatprep.subr.mxu0 0.0
    %743 = vmatpush1.msra.mxu0 0.0
    %744 = vmatprep.subr.mxu0 0.0
    %745 = vmatpush1.msra.mxu0 0.0
    %746 = vmatprep.subr.mxu0 0.0
    %747 = vmatpush1.msra.mxu0 0.0
    %748 = vmatprep.subr.mxu0 0.0
    %749 = vmatpush1.msra.mxu0 0.0
    %750 = vmatprep.subr.mxu0 0.0
    %751 = vmatpush1.msra.mxu0 0.0
    %752 = vmatprep.mubr.f32.mxu0 0.0
    %753 = vmatmul.mubr.f32.gmra.mrb[0].mxu0 %v668
    %v754 = vpop.f32.mrb[0].mxu0
    %v755 = vadd.f32 0.0, %v754
    %v756 = vpop.f32.mrb[0].mxu0
    %757 = vmatprep.mubr.f32.mxu0 0.0
    %758 = vmatmul.mubr.f32.gmra.mrb[0].mxu0 %v669
    %v759 = vpop.f32.mrb[0].mxu0
    %v760 = vadd.f32 0.0, %v759
    %v761 = vpop.f32.mrb[0].mxu0
    %762 = vmatprep.mubr.f32.mxu0 0.0
    %763 = vmatmul.mubr.f32.gmra.mrb[0].mxu0 %v670
    %v764 = vpop.f32.mrb[0].mxu0
    %v765 = vadd.f32 0.0, %v764
    %v766 = vpop.f32.mrb[0].mxu0
    %767 = vmatprep.mubr.f32.mxu0 0.0
    %768 = vmatmul.mubr.f32.gmra.mrb[0].mxu0 %v671
    %v769 = vpop.f32.mrb[0].mxu0
    %v770 = vadd.f32 0.0, %v769
    %v771 = vpop.f32.mrb[0].mxu0
    %772 = vdwg.mxu0
    %v773 = vld [vmem:[%s6] sm:$0xff]
    %v774 = vld [vmem:[%s6 + $0x8] sm:$0xff]
    %v775 = vld [vmem:[%s6 + $0x10] sm:$0xff]
    %v776 = vld [vmem:[%s6 + $0x18] sm:$0xff]
    %v777 = vmul.f32 %v755, %v773
    %v778 = vmul.f32 %v760, %v774
    %v779 = vmul.f32 %v765, %v775
    %v780 = vmul.f32 %v770, %v776
    %v781 = vld [vmem:[%s7] sm:$0x3]
    %v783 = vsel %vm255, %v781, 0
    %785 = vmatprep.subr.mxu0 0.0
    %786 = vmatpush1.msra.mxu0 %v777
    %787 = vmatprep.subr.mxu0 0.0
    %788 = vmatpush1.msra.mxu0 %v778
    %789 = vmatprep.subr.mxu0 0.0
    %790 = vmatpush1.msra.mxu0 %v779
    %791 = vmatprep.subr.mxu0 0.0
    %792 = vmatpush1.msra.mxu0 %v780
    %793 = vmatprep.subr.mxu0 0.0
    %794 = vmatpush1.msra.mxu0 0.0
    %795 = vmatprep.subr.mxu0 0.0
    %796 = vmatpush1.msra.mxu0 0.0
    %797 = vmatprep.subr.mxu0 0.0
    %798 = vmatpush1.msra.mxu0 0.0
    %799 = vmatprep.subr.mxu0 0.0
    %800 = vmatpush1.msra.mxu0 0.0
    %801 = vmatprep.subr.mxu0 0.0
    %802 = vmatpush1.msra.mxu0 0.0
    %803 = vmatprep.subr.mxu0 0.0
    %804 = vmatpush1.msra.mxu0 0.0
    %805 = vmatprep.subr.mxu0 0.0
    %806 = vmatpush1.msra.mxu0 0.0
    %807 = vmatprep.subr.mxu0 0.0
    %808 = vmatpush1.msra.mxu0 0.0
    %809 = vmatprep.subr.mxu0 0.0
    %810 = vmatpush1.msra.mxu0 0.0
    %811 = vmatprep.subr.mxu0 0.0
    %812 = vmatpush1.msra.mxu0 0.0
    %813 = vmatprep.subr.mxu0 0.0
    %814 = vmatpush1.msra.mxu0 0.0
    %815 = vmatprep.subr.mxu0 0.0
    %816 = vmatpush1.msra.mxu0 0.0
    %817 = vmatprep.subr.mxu0 0.0
    %818 = vmatpush1.msra.mxu0 0.0
    %819 = vmatprep.subr.mxu0 0.0
    %820 = vmatpush1.msra.mxu0 0.0
    %821 = vmatprep.subr.mxu0 0.0
    %822 = vmatpush1.msra.mxu0 0.0
    %823 = vmatprep.subr.mxu0 0.0
    %824 = vmatpush1.msra.mxu0 0.0
    %825 = vmatprep.subr.mxu0 0.0
    %826 = vmatpush1.msra.mxu0 0.0
    %827 = vmatprep.subr.mxu0 0.0
    %828 = vmatpush1.msra.mxu0 0.0
    %829 = vmatprep.subr.mxu0 0.0
    %830 = vmatpush1.msra.mxu0 0.0
    %831 = vmatprep.subr.mxu0 0.0
    %832 = vmatpush1.msra.mxu0 0.0
    %833 = vmatprep.subr.mxu0 0.0
    %834 = vmatpush1.msra.mxu0 0.0
    %835 = vmatprep.subr.mxu0 0.0
    %836 = vmatpush1.msra.mxu0 0.0
    %837 = vmatprep.subr.mxu0 0.0
    %838 = vmatpush1.msra.mxu0 0.0
    %839 = vmatprep.subr.mxu0 0.0
    %840 = vmatpush1.msra.mxu0 0.0
    %841 = vmatprep.subr.mxu0 0.0
    %842 = vmatpush1.msra.mxu0 0.0
    %843 = vmatprep.subr.mxu0 0.0
    %844 = vmatpush1.msra.mxu0 0.0
    %845 = vmatprep.subr.mxu0 0.0
    %846 = vmatpush1.msra.mxu0 0.0
    %847 = vmatprep.subr.mxu0 0.0
    %848 = vmatpush1.msra.mxu0 0.0
    %849 = vmatprep.mubr.f32.mxu0 0.0
    %850 = vmatmul.mubr.f32.gmra.mrb[0].mxu0 %v783
    %v851 = vpop.f32.mrb[0].mxu0
    %v852 = vadd.f32 0.0, %v851
    %v853 = vpop.f32.mrb[0].mxu0
    %854 = vdwg.mxu0
    %v855 = vld [vmem:[%s8] sm:$0xff]
    %v856 = vld [vmem:[%s8 + $0x8] sm:$0xff]
    %v857 = vld [vmem:[%s8 + $0x10] sm:$0xff]
    %v858 = vld [vmem:[%s8 + $0x18] sm:$0xff]
    %v859 = vld [vmem:[%s8 + $0x20] sm:$0xff]
    %v860 = vld [vmem:[%s8 + $0x28] sm:$0xff]
    %v861 = vld [vmem:[%s8 + $0x30] sm:$0xff]
    %v862 = vld [vmem:[%s8 + $0x38] sm:$0xff]
    %v863 = vld [vmem:[%s8 + $0x40] sm:$0x3f]
    %v864 = vld [vmem:[%s9] sm:$0x1]
    %v866 = vlaneseq
    %v867 = vshrl.u32 %v866, 7
    %v868 = vsub.s32 0, %v867
    %v869 = vrot.slane %v864, %v868
    %vm871 = vcmask 572416
    %v873 = vsel %vm871, %v852, 0
    %vm875 = vcmask 1045504
    %v877 = vsel %vm875, %v863, 0
    %879 = vmatprep.subr.mxu0 0.0
    %880 = vmatpush1.msra.mxu0 %v855
    %881 = vmatprep.subr.mxu0 0.0
    %882 = vmatpush1.msra.mxu0 %v856
    %883 = vmatprep.subr.mxu0 0.0
    %884 = vmatpush1.msra.mxu0 %v857
    %885 = vmatprep.subr.mxu0 0.0
    %886 = vmatpush1.msra.mxu0 %v858
    %887 = vmatprep.subr.mxu0 0.0
    %888 = vmatpush1.msra.mxu0 %v859
    %889 = vmatprep.subr.mxu0 0.0
    %890 = vmatpush1.msra.mxu0 %v860
    %891 = vmatprep.subr.mxu0 0.0
    %892 = vmatpush1.msra.mxu0 %v861
    %893 = vmatprep.subr.mxu0 0.0
    %894 = vmatpush1.msra.mxu0 %v862
    %895 = vmatprep.subr.mxu0 0.0
    %896 = vmatpush1.msra.mxu0 %v877
    %897 = vmatprep.subr.mxu0 0.0
    %898 = vmatpush1.msra.mxu0 0.0
    %899 = vmatprep.subr.mxu0 0.0
    %900 = vmatpush1.msra.mxu0 0.0
    %901 = vmatprep.subr.mxu0 0.0
    %902 = vmatpush1.msra.mxu0 0.0
    %903 = vmatprep.subr.mxu0 0.0
    %904 = vmatpush1.msra.mxu0 0.0
    %905 = vmatprep.subr.mxu0 0.0
    %906 = vmatpush1.msra.mxu0 0.0
    %907 = vmatprep.subr.mxu0 0.0
    %908 = vmatpush1.msra.mxu0 0.0
    %909 = vmatprep.subr.mxu0 0.0
    %910 = vmatpush1.msra.mxu0 0.0
    %911 = vmatprep.subr.mxu0 0.0
    %912 = vmatpush1.msra.mxu0 0.0
    %913 = vmatprep.subr.mxu0 0.0
    %914 = vmatpush1.msra.mxu0 0.0
    %915 = vmatprep.subr.mxu0 0.0
    %916 = vmatpush1.msra.mxu0 0.0
    %917 = vmatprep.subr.mxu0 0.0
    %918 = vmatpush1.msra.mxu0 0.0
    %919 = vmatprep.subr.mxu0 0.0
    %920 = vmatpush1.msra.mxu0 0.0
    %921 = vmatprep.subr.mxu0 0.0
    %922 = vmatpush1.msra.mxu0 0.0
    %923 = vmatprep.subr.mxu0 0.0
    %924 = vmatpush1.msra.mxu0 0.0
    %925 = vmatprep.subr.mxu0 0.0
    %926 = vmatpush1.msra.mxu0 0.0
    %927 = vmatprep.subr.mxu0 0.0
    %928 = vmatpush1.msra.mxu0 0.0
    %929 = vmatprep.subr.mxu0 0.0
    %930 = vmatpush1.msra.mxu0 0.0
    %931 = vmatprep.subr.mxu0 0.0
    %932 = vmatpush1.msra.mxu0 0.0
    %933 = vmatprep.subr.mxu0 0.0
    %934 = vmatpush1.msra.mxu0 0.0
    %935 = vmatprep.subr.mxu0 0.0
    %936 = vmatpush1.msra.mxu0 0.0
    %937 = vmatprep.subr.mxu0 0.0
    %938 = vmatpush1.msra.mxu0 0.0
    %939 = vmatprep.subr.mxu0 0.0
    %940 = vmatpush1.msra.mxu0 0.0
    %941 = vmatprep.subr.mxu0 0.0
    %942 = vmatpush1.msra.mxu0 0.0
    %943 = vmatprep.mubr.f32.mxu0 0.0
    %944 = vmatmul.mubr.f32.gmra.mrb[0].mxu0 %v873
    %v945 = vpop.f32.mrb[0].mxu0
    %v946 = vadd.f32 %v869, %v945
    %v947 = vpop.f32.mrb[0].mxu0
    %948 = vdwg.mxu0
    %vm949 = vcmask 74752
    %950 = vst.msk [vmem:[#allocation2] sm:$0x3] %vm949, %v946
    // Predicated region
    $region42: #{cnn_forward.1} parent=1 // pred_check
      _
    $region43: #{cnn_forward.1} parent=1 // pred_check_branch
      %952 = sbr.rel (0) target = $region45
    $region44: #{cnn_forward.1} parent=1 // pred_region
      %s954 = ssub.s32 32, 32
      %955 = vsyncadd [#allocation3], %s954
      %s957 = sshll.u32 [#allocation2], 4
      %s958 = int_to_ptr.vmem [resolvable:$true] %s957
      %960 = dma.vmem_to_hbm [thread:$0]  %s958, 32, %s10, [#allocation3]
    $region45: #{cnn_forward.1} parent=1 // pred_fallthru
      _
    // Predicated region
    $region46: #{cnn_forward.1} parent=1 // pred_check
      _
    $region47: #{cnn_forward.1} parent=1 // pred_check_branch
      %962 = sbr.rel (0) target = $region49
    $region48: #{cnn_forward.1} parent=1 // pred_region
      %963 = dma.done [#allocation3], 32
    $region49: #{cnn_forward.1} parent=1 // pred_fallthru
      _
    %964 = vsyncpa [#allocation3], 1

</llo_original>
